<compile_context>
chip_gen: v7x
topology: tpu7x:2x2x1
jax: 0.10.0
libtpu: 0.0.40
codegen_flags: <defaults>
</compile_context>

<pallas_src>
import functools

import jax
import jax.numpy as jnp
from jax.experimental import pallas as pl
from jax.experimental.pallas import tpu as pltpu


def _round_up(x: int, m: int) -> int:
    return ((x + m - 1) // m) * m


def _pick_tile(total: int, desired: int, align: int = 128) -> int:
    """Largest multiple of `align` that divides `total` and is <= desired.

    `total` must be a positive multiple of `align`, so this always terminates
    (worst case it returns `align`).
    """
    t = max(align, (min(desired, total) // align) * align)
    while total % t:
        t -= align
    return t


def _matmul_kernel(s_ref, wt_ref, o_ref, *, tk):
    """Accumulate one (tm, tn) output tile over the K grid axis.

    s_ref  : (tm, Kp)  resident across the whole (j, k) sweep
    wt_ref : (tk, tn)  streamed tile of the pre-transposed weight
    o_ref  : (tm, tn)  float32 output tile used directly as the accumulator
    """
    k = pl.program_id(2)

    @pl.when(k == 0)
    def _():
        o_ref[...] = jnp.zeros_like(o_ref)

    kk = pl.multiple_of(k * tk, tk)
    o_ref[...] += jnp.dot(
        s_ref[:, pl.ds(kk, tk)], wt_ref[...],
        preferred_element_type=jnp.float32,
    )


def linear_tpc_matmul(s, wt_padded, n_out, *, tm_max=256, tn_max=1024, tk_max=2048):
    """pred = s @ W.T, with W.T supplied pre-transposed and pre-padded (init time).

    s         : (P, N) float32
    wt_padded : (round_up(N,128), round_up(n_out,128)) float32 == pad(W.T)
    n_out     : logical number of output features (== N for this module)
    """
    P, N = s.shape
    Kp, Np = wt_padded.shape
    assert Kp == _round_up(N, 128) and Np == _round_up(n_out, 128)
    assert s.dtype == jnp.float32 and wt_padded.dtype == jnp.float32

    # Divisor-aligned tiles: never round K/N up past the 128-aligned size.
    tn = _pick_tile(Np, tn_max, 128)
    tk = _pick_tile(Kp, tk_max, 128)

    tm = min(tm_max, _round_up(P, 8))
    # Keep the double-buffered resident s slab modest so huge-K problems still fit VMEM.
    max_s_bytes = 8 * 1024 * 1024
    tm_cap = max(8, ((max_s_bytes // (2 * 4 * Kp)) // 8) * 8)
    tm = max(8, min(tm, tm_cap))
    Pp = _round_up(P, tm)

    # v7x has 2 TensorCores sharded over the parallel grid axes: if the parallel
    # grid would be 1x1, split N into two tiles (only when tiles stay >= 256 wide).
    if Pp // tm == 1 and Np // tn == 1:
        half = _pick_tile(Np, Np // 2, 128)
        if 256 <= half < Np:
            tn = half

    grid = (Pp // tm, Np // tn, Kp // tk)

    # Only s (tiny) ever needs per-call padding; zero-padding along K is exact.
    s_p = s if (Pp == P and Kp == N) else jnp.pad(s, ((0, Pp - P), (0, Kp - N)))

    # W is pure streaming traffic; deepen its pipeline when there are enough steps.
    w_steps = grid[1] * grid[2]
    if w_steps >= 3:
        w_spec = pl.BlockSpec((tk, tn), lambda i, j, k: (k, j),
                              pipeline_mode=pl.Buffered(3))
    else:
        w_spec = pl.BlockSpec((tk, tn), lambda i, j, k: (k, j))

    cost = pl.CostEstimate(
        flops=2 * Pp * Np * Kp,
        transcendentals=0,
        bytes_accessed=4 * (Pp * Kp + Kp * Np + Pp * Np),
    )

    out_p = pl.pallas_call(
        functools.partial(_matmul_kernel, tk=tk),
        out_shape=jax.ShapeDtypeStruct((Pp, Np), jnp.float32),
        grid_spec=pltpu.PrefetchScalarGridSpec(
            num_scalar_prefetch=0,
            grid=grid,
            in_specs=[
                # s resident across the whole (j, k) sweep.
                pl.BlockSpec((tm, Kp), lambda i, j, k: (i, 0)),
                w_spec,
            ],
            out_specs=pl.BlockSpec((tm, tn), lambda i, j, k: (i, j)),
        ),
        compiler_params=pltpu.CompilerParams(
            dimension_semantics=("parallel", "parallel", "arbitrary"),
            # 3x W tile (<=24 MiB) + 2x s slab (<=8 MiB) + 2x out tile (<=2 MiB)
            # stays under this; 48 MiB is safe on v7x (64 MiB VMEM) and leaves
            # ample headroom on v5e/v6e (128 MiB).
            vmem_limit_bytes=48 * 1024 * 1024,
        ),
        cost_estimate=cost,
    )(s_p, wt_padded)

    if Pp == P and Np == n_out:
        return out_p
    return out_p[:P, :n_out]


class LinearSingleLayertPCPallas:
    """Pallas port of LinearSingleLayertPC: forward/recall compute s @ Wr.T.

    The weight is transposed and padded ONCE here (parameter/init time), so the
    per-call forward adds no extra HBM traffic on the NxN weight.
    """

    def __init__(self, w):
        w = jnp.asarray(w, dtype=jnp.float32)
        n_out, n_in = w.shape
        assert n_out == n_in, "LinearSingleLayertPC uses a square recurrent weight"
        self.input_size = n_in
        kp = _round_up(n_in, 128)
        np_ = _round_up(n_out, 128)
        wt = w.T  # (in, out) -> straight MXU feed, no per-tile transpose
        if wt.shape != (kp, np_):
            wt = jnp.pad(wt, ((0, kp - n_in), (0, np_ - n_out)))
        self.wt = wt

    def __call__(self, s, **tile_kwargs):
        s = jnp.asarray(s, dtype=jnp.float32)
        assert s.ndim == 2 and s.shape[1] == self.input_size
        return linear_tpc_matmul(s, self.wt, self.input_size, **tile_kwargs)

    forward = __call__
    recall = __call__


if __name__ == "__main__":
    key = jax.random.PRNGKey(0)
    k_w, k_x, k_w2, k_x2 = jax.random.split(key, 4)

    # --- small shapes consistent with the module: input_size=32, seq len P=8 ---
    input_size, seq_len = 32, 8
    bound = 1.0 / (input_size ** 0.5)
    Wr = jax.random.uniform(k_w, (input_size, input_size), jnp.float32,
                            minval=-bound, maxval=bound)
    s = jax.random.normal(k_x, (seq_len, input_size), jnp.float32)

    model = LinearSingleLayertPCPallas(Wr)
    pred = jax.block_until_ready(model(s))
    ref = s @ Wr.T
    assert pred.shape == (seq_len, input_size)
    assert jnp.allclose(pred, ref, atol=1e-5, rtol=1e-5)

    # --- non-trivial size (N=640): divisor-aligned tiles -> no over-padding ---
    n2, p2 = 640, 16
    bound2 = 1.0 / (n2 ** 0.5)
    Wr2 = jax.random.uniform(k_w2, (n2, n2), jnp.float32,
                             minval=-bound2, maxval=bound2)
    s2 = jax.random.normal(k_x2, (p2, n2), jnp.float32)
    model2 = LinearSingleLayertPCPallas(Wr2)

    pred2 = jax.block_until_ready(model2(s2))
    ref2 = s2 @ Wr2.T
    assert pred2.shape == (p2, n2)
    assert jnp.allclose(pred2, ref2, atol=1e-4, rtol=1e-4)

    # --- force a multi-tile (j, k) sweep to exercise K-accumulation into o_ref,
    #     the resident-s dynamic slicing, and the Buffered(3) W pipeline. ---
    pred3 = jax.block_until_ready(model2(s2, tn_max=128, tk_max=128))
    assert jnp.allclose(pred3, ref2, atol=1e-4, rtol=1e-4)

    print("KERNEL_OK")
</pallas_src>

<mosaic_0001>
module attributes {stable_mosaic.version = 11 : i64} {
  func.func @_matmul_kernel(%arg0: i32, %arg1: i32, %arg2: i32, %arg3: memref<8x128xf32, #tpu.memory_space<vmem>>, %arg4: memref<128x128xf32, #tpu.memory_space<vmem>>, %arg5: memref<8x128xf32, #tpu.memory_space<vmem>>) attributes {dimension_semantics = [#tpu.dimension_semantics<parallel>, #tpu.dimension_semantics<parallel>, #tpu.dimension_semantics<arbitrary>], iteration_bounds = array<i64: 1, 1, 1>, scalar_prefetch = 0 : i64, scratch_operands = 0 : i64, tpu.core_type = #tpu.core_type<tc>, window_params = [{transform_indices = @transform_0, window_bounds = array<i64: 8, 128>}, {transform_indices = @transform_1, window_bounds = array<i64: 128, 128>}, {transform_indices = @transform_2, window_bounds = array<i64: 8, 128>}]} {
    %c0_i32 = arith.constant 0 : i32
    %0 = arith.cmpi eq, %arg2, %c0_i32 : i32
    %1 = arith.extui %0 : i1 to i32
    %c0_i32_0 = arith.constant 0 : i32
    %2 = arith.cmpi ne, %1, %c0_i32_0 : i32
    scf.if %2 {
      %cst_7 = arith.constant 0.000000e+00 : f32
      %12 = vector.broadcast %cst_7 : f32 to vector<8x128xf32>
      %c0_8 = arith.constant 0 : index
      %c0_9 = arith.constant 0 : index
      %13 = vector.load %arg5[%c0_8, %c0_9] : memref<8x128xf32, #tpu.memory_space<vmem>>, vector<8x128xf32>
      tpu.vector_store %arg5[%c0_8, %c0_9], %12 {strides = array<i32>} : memref<8x128xf32, #tpu.memory_space<vmem>>, vector<8x128xf32>,
    } else {
    }
    %c128_i32 = arith.constant 128 : i32
    %3 = arith.muli %arg2, %c128_i32 : i32
    %4 = tpu.assume_multiple %3, 128 : i32
    %c0 = arith.constant 0 : index
    %c0_1 = arith.constant 0 : index
    %5 = vector.load %arg5[%c0, %c0_1] : memref<8x128xf32, #tpu.memory_space<vmem>>, vector<8x128xf32>
    %c0_2 = arith.constant 0 : index
    %6 = arith.index_cast %4 : i32 to index
    %7 = vector.load %arg3[%c0_2, %6] : memref<8x128xf32, #tpu.memory_space<vmem>>, vector<8x128xf32>
    %c0_3 = arith.constant 0 : index
    %c0_4 = arith.constant 0 : index
    %8 = vector.load %arg4[%c0_3, %c0_4] : memref<128x128xf32, #tpu.memory_space<vmem>>, vector<128x128xf32>
    %cst = arith.constant dense<0.000000e+00> : vector<8x128xf32>
    %9 = tpu.matmul %7, %8, %cst {dimension_numbers = #tpu.dot_dimension_numbers<[1], [0], [0], [1], [0, 0, 1, 1], [], []>} : vector<8x128xf32>, vector<128x128xf32>, vector<8x128xf32> -> vector<8x128xf32>
    %10 = arith.addf %5, %9 : vector<8x128xf32>
    %c0_5 = arith.constant 0 : index
    %c0_6 = arith.constant 0 : index
    %11 = vector.load %arg5[%c0_5, %c0_6] : memref<8x128xf32, #tpu.memory_space<vmem>>, vector<8x128xf32>
    tpu.vector_store %arg5[%c0_5, %c0_6], %10 {strides = array<i32>} : memref<8x128xf32, #tpu.memory_space<vmem>>, vector<8x128xf32>,
    return
  }
  func.func @transform_0(%arg0: i32, %arg1: i32, %arg2: i32) -> (i32, i32) {
    %c0_i32 = arith.constant 0 : i32
    %c0_i32_0 = arith.constant 0 : i32
    return %arg0, %c0_i32 : i32, i32
  }
  func.func @transform_1(%arg0: i32, %arg1: i32, %arg2: i32) -> (i32, i32) {
    %c0_i32 = arith.constant 0 : i32
    return %arg2, %arg1 : i32, i32
  }
  func.func @transform_2(%arg0: i32, %arg1: i32, %arg2: i32) -> (i32, i32) {
    %c0_i32 = arith.constant 0 : i32
    return %arg0, %arg1 : i32, i32
  }
}

</mosaic_0001>

<llo_original>
// kernel: tpu_custom_call.1
$region0: #{tpu_custom_call.1}
  #allocation0 [shape = 'u32[]', space=smem, size = 0x4, offset = 0x4, fixed_abs, tag = 'smem constant byte address 0x4 - core index']
  #allocation1 [shape = 'u32[144,128]{1,0:T(1,128)}', space=vmem, size = 0x12000, scoped, tag = 'internal scratch']
  %s0 = inlined_call_operand.hbm [shape: f32[8,128], index: 0, kind: input, shape index: {}]
  %s1 = inlined_call_operand.hbm [shape: f32[128,128], index: 1, kind: input, shape index: {}]
  %s2 = inlined_call_operand.hbm [shape: f32[8,128], index: 2, kind: output, shape index: {}]
  %s3 = sld [smem:[#allocation0]]
  $region30: #{tpu_custom_call.1} parent=0
    _
  %s5 = ssub.s32 1, %s3
  %s6 = scalar_select 0, %s5, %s3
  $region1: #{tpu_custom_call.1} parent=0
    #allocation2 [shape = 'u8[4096]{0}', space=vmem, size = 0x1000, scoped, tag = 'input window, operand 0, single buffered']
    #allocation3 [shape = 's32[1]{0}', space=sflag, size = 0x4, scoped, tag = 'scoped memory for tpu_custom_call.1']
    #allocation4 [shape = 's32[1]{0}', space=sflag, size = 0x4, scoped, tag = 'scoped memory for tpu_custom_call.1']
    #allocation5 [shape = 'u8[65536]{0}', space=vmem, size = 0x10000, scoped, tag = 'input window, operand 1, single buffered']
    #allocation6 [shape = 's32[1]{0}', space=sflag, size = 0x4, scoped, tag = 'scoped memory for tpu_custom_call.1']
    #allocation7 [shape = 'u8[4096]{0}', space=vmem, size = 0x1000, scoped, tag = 'output window, operand 0, single buffered']
    %7 = vsyncpa [#allocation3], 0
    %8 = vsyncpa [#allocation6], 0
    %9 = vsyncpa [#allocation4], 0
    // Predicated region
    $region2: #{tpu_custom_call.1} parent=1 // pred_check
      _
    $region3: #{tpu_custom_call.1} parent=1 // pred_check_branch
      %11 = sbr.rel (0) target = $region5
    $region4: #{tpu_custom_call.1} parent=1 // pred_region
      %s13 = ssub.s32 128, 128
      %14 = vsyncadd [#allocation3], %s13
      %s16 = sshll.u32 [#allocation2], 4
      %s17 = int_to_ptr.vmem [resolvable:$true] %s16
      %19 = dma.hbm_to_vmem [thread:$0]  %s0, 128, %s17, [#allocation3]
    $region5: #{tpu_custom_call.1} parent=1 // pred_fallthru
      _
    // Predicated region
    $region6: #{tpu_custom_call.1} parent=1 // pred_check
      _
    $region7: #{tpu_custom_call.1} parent=1 // pred_check_branch
      %21 = sbr.rel (0) target = $region9
    $region8: #{tpu_custom_call.1} parent=1 // pred_region
      %s23 = ssub.s32 2048, 2048
      %24 = vsyncadd [#allocation6], %s23
      %s25 = sshll.u32 [#allocation5], 4
      %s26 = int_to_ptr.vmem [resolvable:$true] %s25
      %31 = dma.hbm_to_vmem [thread:$0]  %s1, 2048, %s26, [#allocation6], 128, 128, 8
    $region9: #{tpu_custom_call.1} parent=1 // pred_fallthru
      _
    // Predicated region
    $region10: #{tpu_custom_call.1} parent=1 // pred_check
      _
    $region11: #{tpu_custom_call.1} parent=1 // pred_check_branch
      %33 = sbr.rel (0) target = $region13
    $region12: #{tpu_custom_call.1} parent=1 // pred_region
      %34 = dma.done [#allocation3], 128
    $region13: #{tpu_custom_call.1} parent=1 // pred_fallthru
      _
    // Predicated region
    $region14: #{tpu_custom_call.1} parent=1 // pred_check
      _
    $region15: #{tpu_custom_call.1} parent=1 // pred_check_branch
      %36 = sbr.rel (0) target = $region17
    $region16: #{tpu_custom_call.1} parent=1 // pred_region
      %37 = dma.done [#allocation6], 2048
    $region17: #{tpu_custom_call.1} parent=1 // pred_fallthru
      _
    %p38 = scmp.eq.s32.totalorder 0, 0
    // Predicated region
    $region18: #{tpu_custom_call.1} parent=1 // pred_check
      %p39 = pneg %p38
    $region19: #{tpu_custom_call.1} parent=1 // pred_check_branch
      %41 = sbr.rel (%p39) target = $region21
    $region20: #{tpu_custom_call.1} parent=1 // pred_region
      %42 = vst [vmem:[#allocation7] sm:$0xff] 0.0
    $region21: #{tpu_custom_call.1} parent=1 // pred_fallthru
      _
    %s43 = smul.u32 0, 128
    %v44 = vld [vmem:[#allocation7] sm:$0xff]
    %s45 = sshra.s32 %s43, 7
    %s46 = sand.u32 %s43, 127
    %s47 = scalar_lea.vmem [#allocation2], %s45
    %v48 = vld [vmem:[%s47] sm:$0xff]
    %v49 = vld [vmem:[#allocation5] sm:$0xff]
    %v50 = vld [vmem:[#allocation5 + $0x8] sm:$0xff]
    %v51 = vld [vmem:[#allocation5 + $0x10] sm:$0xff]
    %v52 = vld [vmem:[#allocation5 + $0x18] sm:$0xff]
    %v53 = vld [vmem:[#allocation5 + $0x20] sm:$0xff]
    %v54 = vld [vmem:[#allocation5 + $0x28] sm:$0xff]
    %v55 = vld [vmem:[#allocation5 + $0x30] sm:$0xff]
    %v56 = vld [vmem:[#allocation5 + $0x38] sm:$0xff]
    %v57 = vld [vmem:[#allocation5 + $0x40] sm:$0xff]
    %v58 = vld [vmem:[#allocation5 + $0x48] sm:$0xff]
    %v59 = vld [vmem:[#allocation5 + $0x50] sm:$0xff]
    %v60 = vld [vmem:[#allocation5 + $0x58] sm:$0xff]
    %v61 = vld [vmem:[#allocation5 + $0x60] sm:$0xff]
    %v62 = vld [vmem:[#allocation5 + $0x68] sm:$0xff]
    %v63 = vld [vmem:[#allocation5 + $0x70] sm:$0xff]
    %v64 = vld [vmem:[#allocation5 + $0x78] sm:$0xff]
    %65 = vmatprep.subr.mxu0 0.0
    %66 = vmatpush1.msra.mxu0 %v49
    %67 = vmatprep.subr.mxu0 0.0
    %68 = vmatpush1.msra.mxu0 %v50
    %69 = vmatprep.subr.mxu0 0.0
    %70 = vmatpush1.msra.mxu0 %v51
    %71 = vmatprep.subr.mxu0 0.0
    %72 = vmatpush1.msra.mxu0 %v52
    %73 = vmatprep.subr.mxu0 0.0
    %74 = vmatpush1.msra.mxu0 %v53
    %75 = vmatprep.subr.mxu0 0.0
    %76 = vmatpush1.msra.mxu0 %v54
    %77 = vmatprep.subr.mxu0 0.0
    %78 = vmatpush1.msra.mxu0 %v55
    %79 = vmatprep.subr.mxu0 0.0
    %80 = vmatpush1.msra.mxu0 %v56
    %81 = vmatprep.subr.mxu0 0.0
    %82 = vmatpush1.msra.mxu0 %v57
    %83 = vmatprep.subr.mxu0 0.0
    %84 = vmatpush1.msra.mxu0 %v58
    %85 = vmatprep.subr.mxu0 0.0
    %86 = vmatpush1.msra.mxu0 %v59
    %87 = vmatprep.subr.mxu0 0.0
    %88 = vmatpush1.msra.mxu0 %v60
    %89 = vmatprep.subr.mxu0 0.0
    %90 = vmatpush1.msra.mxu0 %v61
    %91 = vmatprep.subr.mxu0 0.0
    %92 = vmatpush1.msra.mxu0 %v62
    %93 = vmatprep.subr.mxu0 0.0
    %94 = vmatpush1.msra.mxu0 %v63
    %95 = vmatprep.subr.mxu0 0.0
    %96 = vmatpush1.msra.mxu0 %v64
    %97 = vmatprep.subr.mxu0 0.0
    %98 = vmatpush1.msra.mxu0 0.0
    %99 = vmatprep.subr.mxu0 0.0
    %100 = vmatpush1.msra.mxu0 0.0
    %101 = vmatprep.subr.mxu0 0.0
    %102 = vmatpush1.msra.mxu0 0.0
    %103 = vmatprep.subr.mxu0 0.0
    %104 = vmatpush1.msra.mxu0 0.0
    %105 = vmatprep.subr.mxu0 0.0
    %106 = vmatpush1.msra.mxu0 0.0
    %107 = vmatprep.subr.mxu0 0.0
    %108 = vmatpush1.msra.mxu0 0.0
    %109 = vmatprep.subr.mxu0 0.0
    %110 = vmatpush1.msra.mxu0 0.0
    %111 = vmatprep.subr.mxu0 0.0
    %112 = vmatpush1.msra.mxu0 0.0
    %113 = vmatprep.subr.mxu0 0.0
    %114 = vmatpush1.msra.mxu0 0.0
    %115 = vmatprep.subr.mxu0 0.0
    %116 = vmatpush1.msra.mxu0 0.0
    %117 = vmatprep.subr.mxu0 0.0
    %118 = vmatpush1.msra.mxu0 0.0
    %119 = vmatprep.subr.mxu0 0.0
    %120 = vmatpush1.msra.mxu0 0.0
    %121 = vmatprep.subr.mxu0 0.0
    %122 = vmatpush1.msra.mxu0 0.0
    %123 = vmatprep.subr.mxu0 0.0
    %124 = vmatpush1.msra.mxu0 0.0
    %125 = vmatprep.subr.mxu0 0.0
    %126 = vmatpush1.msra.mxu0 0.0
    %127 = vmatprep.subr.mxu0 0.0
    %128 = vmatpush1.msra.mxu0 0.0
    %129 = vmatprep.mubr.f32.mxu0 0.0
    %130 = vmatmul.mubr.f32.gmra.mrb[0].mxu0 %v48
    %v131 = vpop.f32.mrb[0].mxu0
    %v132 = vadd.f32 0.0, %v131
    %v133 = vpop.f32.mrb[0].mxu0
    %134 = vdwg.mxu0
    %v135 = vadd.f32 %v44, %v132
    %136 = vst [vmem:[#allocation7] sm:$0xff] %v135
    // Predicated region
    $region22: #{tpu_custom_call.1} parent=1 // pred_check
      _
    $region23: #{tpu_custom_call.1} parent=1 // pred_check_branch
      %138 = sbr.rel (0) target = $region25
    $region24: #{tpu_custom_call.1} parent=1 // pred_region
      %s140 = ssub.s32 128, 128
      %141 = vsyncadd [#allocation4], %s140
      %s143 = sshll.u32 [#allocation7], 4
      %s144 = int_to_ptr.vmem [resolvable:$true] %s143
      %146 = dma.vmem_to_hbm [thread:$0]  %s144, 128, %s2, [#allocation4]
    $region25: #{tpu_custom_call.1} parent=1 // pred_fallthru
      _
    // Predicated region
    $region26: #{tpu_custom_call.1} parent=1 // pred_check
      _
    $region27: #{tpu_custom_call.1} parent=1 // pred_check_branch
      %148 = sbr.rel (0) target = $region29
    $region28: #{tpu_custom_call.1} parent=1 // pred_region
      %149 = dma.done [#allocation4], 128
    $region29: #{tpu_custom_call.1} parent=1 // pred_fallthru
      _
    %150 = vsyncpa [#allocation3], 1
    %151 = vsyncpa [#allocation6], 1
    %152 = vsyncpa [#allocation4], 1

</llo_original>
